<compile_context>
chip_gen: v7x
topology: tpu7x:2x2x1
jax: 0.10.0
libtpu: 0.0.40
codegen_flags: <defaults>
</compile_context>

<pallas_src>
import math

import jax
import jax.numpy as jnp
from jax.experimental import pallas as pl
from jax.experimental.pallas import tpu as pltpu


def _round_up(n, m):
    return ((n + m - 1) // m) * m


def _diag_gaussian_kernel(xm_ref, xs_ref, my_ref, sy_ref, mean_ref, std_ref):
    """One (TILE_B, D) batch tile of DiagGaussianDensity.forward."""
    sy = sy_ref[...]                                   # (1, D) -> broadcast
    # mean = raw_mean * Sy + my
    mean_ref[...] = xm_ref[...] * sy + my_ref[...]
    # std = sigmoid(raw_std) * Sy   (exp goes to the EUP slot)
    std = 1.0 / (1.0 + jnp.exp(-xs_ref[...]))
    std_ref[...] = std * sy


def diag_gaussian_density_forward(x, output_dims, scaling_params=None,
                                  return_samples=False, rng_key=None,
                                  tile_b=512):
    """JAX/Pallas mirror of DiagGaussianDensity.forward.

    x: (..., >=2*output_dims) array. Returns (mean, std) each (..., D),
    or a sample if return_samples=True.
    """
    D = int(output_dims)
    if x.shape[-1] < 2 * D:
        raise ValueError("last dim of x must be >= 2*output_dims")

    lead = x.shape[:-1]
    B = int(math.prod(lead)) if lead else 1
    x2 = jnp.asarray(x, jnp.float32).reshape(B, x.shape[-1])

    # ---- glue (layout plumbing): split into two lane-clean (B, D) slabs so
    # the kernel never slices at an unaligned column inside a vreg. ----
    x_mean = x2[:, :D]
    x_std = x2[:, D:2 * D]

    if scaling_params is not None and len(scaling_params) == 2:
        my = jnp.asarray(scaling_params[0], jnp.float32).reshape(1, D)
        sy = jnp.asarray(scaling_params[1], jnp.float32).reshape(1, D)
    else:
        # Unscaled PyTorch path == identity affine.
        my = jnp.zeros((1, D), jnp.float32)
        sy = jnp.ones((1, D), jnp.float32)

    # ---- batch tiling: TILE_B multiple of 8; pad batch to a multiple of it.
    TILE_B = max(8, min(_round_up(tile_b, 8), _round_up(B, 8)))
    Bp = _round_up(max(B, 1), TILE_B)
    if Bp != B:
        pad = Bp - B
        x_mean = jnp.pad(x_mean, ((0, pad), (0, 0)))
        x_std = jnp.pad(x_std, ((0, pad), (0, 0)))

    grid = (Bp // TILE_B,)
    row_spec = pl.BlockSpec((TILE_B, D), lambda i: (i, 0))   # streamed tiles
    vec_spec = pl.BlockSpec((1, D), lambda i: (0, 0))        # VMEM-resident

    mean, std = pl.pallas_call(
        _diag_gaussian_kernel,
        out_shape=(jax.ShapeDtypeStruct((Bp, D), jnp.float32),
                   jax.ShapeDtypeStruct((Bp, D), jnp.float32)),
        grid=grid,
        in_specs=[row_spec, row_spec, vec_spec, vec_spec],
        out_specs=(row_spec, row_spec),
        compiler_params=pltpu.CompilerParams(
            dimension_semantics=("parallel",)),
    )(x_mean, x_std, my, sy)

    mean = mean[:B].reshape(lead + (D,))
    std = std[:B].reshape(lead + (D,))

    if return_samples:
        # TODO(synk): the torch.randn_like draw is done with jax.random in the
        # wrapper rather than pltpu.prng_* inside the kernel.
        if rng_key is None:
            rng_key = jax.random.PRNGKey(0)
        z = jax.random.normal(rng_key, mean.shape, mean.dtype)
        return mean + z * std
    return mean, std


if __name__ == "__main__":
    key = jax.random.PRNGKey(0)
    k_x, k_my, k_sy = jax.random.split(key, 3)

    # prob_mbrl-style small shapes: output_dims D = 5 (4 next-state dims +
    # reward), so the density head consumes 2*D = 10 features; batch = 64.
    D = 5
    batch = 64
    x = jax.random.normal(k_x, (batch, 2 * D), jnp.float32)
    my = jax.random.normal(k_my, (1, D), jnp.float32) * 0.5
    Sy = jax.random.uniform(k_sy, (1, D), jnp.float32, minval=0.5, maxval=2.0)

    # tile_b=16 -> 4 pipelined grid steps even at this small demo batch.
    mean, std = diag_gaussian_density_forward(
        x, D, scaling_params=(my, Sy), tile_b=16)
    jax.block_until_ready((mean, std))

    # Pure-JAX reference of the PyTorch forward (scaled path).
    ref_mean = x[:, :D] * Sy + my
    ref_std = jax.nn.sigmoid(x[:, D:2 * D]) * Sy
    assert mean.shape == (batch, D) and std.shape == (batch, D)
    assert jnp.allclose(mean, ref_mean, atol=1e-5, rtol=1e-5)
    assert jnp.allclose(std, ref_std, atol=1e-5, rtol=1e-5)
    assert bool(jnp.all(std > 0.0))

    # Unscaled path (scaling_params=None).
    mean_u, std_u = diag_gaussian_density_forward(x, D, tile_b=16)
    jax.block_until_ready((mean_u, std_u))
    assert jnp.allclose(mean_u, x[:, :D], atol=1e-5, rtol=1e-5)
    assert jnp.allclose(std_u, jax.nn.sigmoid(x[:, D:2 * D]),
                        atol=1e-5, rtol=1e-5)

    print("KERNEL_OK")
</pallas_src>

<mosaic_0001>
module attributes {stable_mosaic.version = 11 : i64} {
  func.func @_diag_gaussian_kernel(%arg0: i32, %arg1: memref<16x5xf32, #tpu.memory_space<vmem>>, %arg2: memref<16x5xf32, #tpu.memory_space<vmem>>, %arg3: memref<1x5xf32, #tpu.memory_space<vmem>>, %arg4: memref<1x5xf32, #tpu.memory_space<vmem>>, %arg5: memref<16x5xf32, #tpu.memory_space<vmem>>, %arg6: memref<16x5xf32, #tpu.memory_space<vmem>>) attributes {dimension_semantics = [#tpu.dimension_semantics<parallel>], iteration_bounds = array<i64: 4>, scalar_prefetch = 0 : i64, scratch_operands = 0 : i64, tpu.core_type = #tpu.core_type<tc>, window_params = [{transform_indices = @transform_0, window_bounds = array<i64: 16, 5>}, {transform_indices = @transform_1, window_bounds = array<i64: 16, 5>}, {pipeline_mode = #tpu.pipeline_mode<synchronous>, transform_indices = @transform_2, window_bounds = array<i64: 1, 5>}, {pipeline_mode = #tpu.pipeline_mode<synchronous>, transform_indices = @transform_3, window_bounds = array<i64: 1, 5>}, {transform_indices = @transform_4, window_bounds = array<i64: 16, 5>}, {transform_indices = @transform_5, window_bounds = array<i64: 16, 5>}]} {
    %c0 = arith.constant 0 : index
    %c0_0 = arith.constant 0 : index
    %0 = vector.load %arg4[%c0, %c0_0] : memref<1x5xf32, #tpu.memory_space<vmem>>, vector<1x5xf32>
    %c0_1 = arith.constant 0 : index
    %c0_2 = arith.constant 0 : index
    %1 = vector.load %arg1[%c0_1, %c0_2] : memref<16x5xf32, #tpu.memory_space<vmem>>, vector<16x5xf32>
    %2 = vector.broadcast %0 : vector<1x5xf32> to vector<16x5xf32>
    %3 = arith.mulf %1, %2 : vector<16x5xf32>
    %c0_3 = arith.constant 0 : index
    %c0_4 = arith.constant 0 : index
    %4 = vector.load %arg3[%c0_3, %c0_4] : memref<1x5xf32, #tpu.memory_space<vmem>>, vector<1x5xf32>
    %5 = vector.broadcast %4 : vector<1x5xf32> to vector<16x5xf32>
    %6 = arith.addf %3, %5 : vector<16x5xf32>
    %c0_5 = arith.constant 0 : index
    %c0_6 = arith.constant 0 : index
    %7 = vector.load %arg5[%c0_5, %c0_6] : memref<16x5xf32, #tpu.memory_space<vmem>>, vector<16x5xf32>
    tpu.vector_store %arg5[%c0_5, %c0_6], %6 {strides = array<i32>} : memref<16x5xf32, #tpu.memory_space<vmem>>, vector<16x5xf32>,
    %c0_7 = arith.constant 0 : index
    %c0_8 = arith.constant 0 : index
    %8 = vector.load %arg2[%c0_7, %c0_8] : memref<16x5xf32, #tpu.memory_space<vmem>>, vector<16x5xf32>
    %cst = arith.constant 0.000000e+00 : f32
    %9 = vector.broadcast %cst : f32 to vector<16x5xf32>
    %10 = arith.subf %9, %8 : vector<16x5xf32>
    %11 = math.exp %10 : vector<16x5xf32>
    %cst_9 = arith.constant 1.000000e+00 : f32
    %12 = vector.broadcast %cst_9 : f32 to vector<16x5xf32>
    %13 = arith.addf %12, %11 : vector<16x5xf32>
    %cst_10 = arith.constant 1.000000e+00 : f32
    %14 = vector.broadcast %cst_10 : f32 to vector<16x5xf32>
    %15 = arith.divf %14, %13 : vector<16x5xf32>
    %16 = vector.broadcast %0 : vector<1x5xf32> to vector<16x5xf32>
    %17 = arith.mulf %15, %16 : vector<16x5xf32>
    %c0_11 = arith.constant 0 : index
    %c0_12 = arith.constant 0 : index
    %18 = vector.load %arg6[%c0_11, %c0_12] : memref<16x5xf32, #tpu.memory_space<vmem>>, vector<16x5xf32>
    tpu.vector_store %arg6[%c0_11, %c0_12], %17 {strides = array<i32>} : memref<16x5xf32, #tpu.memory_space<vmem>>, vector<16x5xf32>,
    return
  }
  func.func @transform_0(%arg0: i32) -> (i32, i32) {
    %c0_i32 = arith.constant 0 : i32
    %c0_i32_0 = arith.constant 0 : i32
    return %arg0, %c0_i32 : i32, i32
  }
  func.func @transform_1(%arg0: i32) -> (i32, i32) {
    %c0_i32 = arith.constant 0 : i32
    %c0_i32_0 = arith.constant 0 : i32
    return %arg0, %c0_i32 : i32, i32
  }
  func.func @transform_2(%arg0: i32) -> (i32, i32) {
    %c0_i32 = arith.constant 0 : i32
    %c0_i32_0 = arith.constant 0 : i32
    %c0_i32_1 = arith.constant 0 : i32
    return %c0_i32, %c0_i32_0 : i32, i32
  }
  func.func @transform_3(%arg0: i32) -> (i32, i32) {
    %c0_i32 = arith.constant 0 : i32
    %c0_i32_0 = arith.constant 0 : i32
    %c0_i32_1 = arith.constant 0 : i32
    return %c0_i32, %c0_i32_0 : i32, i32
  }
  func.func @transform_4(%arg0: i32) -> (i32, i32) {
    %c0_i32 = arith.constant 0 : i32
    %c0_i32_0 = arith.constant 0 : i32
    return %arg0, %c0_i32 : i32, i32
  }
  func.func @transform_5(%arg0: i32) -> (i32, i32) {
    %c0_i32 = arith.constant 0 : i32
    %c0_i32_0 = arith.constant 0 : i32
    return %arg0, %c0_i32 : i32, i32
  }
}

</mosaic_0001>

<llo_original>
// kernel: tpu_custom_call.1
$region0: #{tpu_custom_call.1}
  #allocation0 [shape = 'u32[]', space=smem, size = 0x4, offset = 0x4, fixed_abs, tag = 'smem constant byte address 0x4 - core index']
  #allocation1 [shape = 'u32[144,128]{1,0:T(1,128)}', space=vmem, size = 0x12000, scoped, tag = 'internal scratch']
  %s0 = inlined_call_operand.vmem [shape: f32[64,5], index: 0, kind: input, shape index: {}]
  %s1 = inlined_call_operand.vmem [shape: f32[64,5], index: 1, kind: input, shape index: {}]
  %s2 = inlined_call_operand.vmem [shape: f32[1,5], index: 2, kind: input, shape index: {}]
  %s3 = inlined_call_operand.vmem [shape: f32[1,5], index: 3, kind: input, shape index: {}]
  %s4 = inlined_call_operand.vmem [shape: f32[64,5], index: 4, kind: output, shape index: {0}]
  %s5 = inlined_call_operand.vmem [shape: f32[64,5], index: 5, kind: output, shape index: {1}]
  %6 = xla_tuple %s4, %s5
  %s7 = sld [smem:[#allocation0]]
  $region57: #{tpu_custom_call.1} parent=0
    _
  %s9 = ssub.s32 1, %s7
  %s10 = scalar_select 0, %s9, %s7
  loop: start=0, step=1, limit=6
  $region2: #{tpu_custom_call.1} parent=0 // loop_pre_header
    _
  $region3: #{tpu_custom_call.1} parent=0 // loop_header
    %s12 = sphi 0, %s16
    %p13 = scmp.ge.s32.totalorder %s12, 6
    %s22 = sphi 0, %s24
    %s25 = sphi 0, %s22
    %s26 = sphi 0, %s25
    %s42 = sphi 0, %s26
    %s48 = sphi 0, %s50
    %s51 = sphi 0, %s48
    %s52 = sphi 0, %s51
    %s68 = sphi 0, %s52
    %s72 = sphi 0, %s72
    %s74 = sphi 0, %s72
    %s75 = sphi 0, %s74
    %s89 = sphi 0, %s75
    %s93 = sphi 0, %s93
    %s95 = sphi 0, %s93
    %s96 = sphi 0, %s95
    %s110 = sphi 0, %s96
    %s116 = sphi 0, %s118
    %s119 = sphi 0, %s116
    %s120 = sphi 0, %s119
    %s136 = sphi 0, %s120
    %s142 = sphi 0, %s144
    %s145 = sphi 0, %s142
    %s146 = sphi 0, %s145
    %s162 = sphi 0, %s146
  $region4: #{tpu_custom_call.1} parent=0 // loop_header_branch
    %15 = sbr.rel (%p13) target = $region8
  $region5: #{tpu_custom_call.1} parent=0 // loop_body
    %s17 = ssub.s32 %s12, 1
    %s18 = ssub.s32 %s12, 2
    %s19 = sadd.s32 %s12, 1
    %s20 = ssub.s32 %s12, %s19
    %p21 = scmp.eq.s32.totalorder %s20, 0
    %s23 = sadd.s32 %s22, 1
    %s24 = scalar_select %p21, %s22, %s23
    %p27 = pneg %p21
    %p28 = scmp.eq.s32.totalorder %s12, 3
    %p29 = por %p27, %p28
    %p30 = scmp.ne.s32.totalorder %s22, %s25
    %p31 = scmp.eq.s32.totalorder %s12, 0
    %p32 = por %p30, %p31
    %p33 = scmp.ne.s32.totalorder %s22, %s25
    %p34 = scmp.eq.s32.totalorder %s17, 3
    %p35 = por %p33, %p34
    %p36 = scmp.ne.s32.totalorder %s25, %s26
    %p37 = scmp.eq.s32.totalorder %s17, 0
    %p38 = por %p36, %p37
    %p39 = scmp.ne.s32.totalorder %s25, %s26
    %p40 = scmp.eq.s32.totalorder %s18, 3
    %p41 = por %p39, %p40
    %p43 = scmp.ne.s32.totalorder %s26, %s42
    %p44 = scmp.eq.s32.totalorder %s18, 0
    %p45 = por %p43, %p44
    %s46 = ssub.s32 %s12, %s19
    %p47 = scmp.eq.s32.totalorder %s46, 0
    %s49 = sadd.s32 %s48, 1
    %s50 = scalar_select %p47, %s48, %s49
    %p53 = pneg %p47
    %p54 = scmp.eq.s32.totalorder %s12, 3
    %p55 = por %p53, %p54
    %p56 = scmp.ne.s32.totalorder %s48, %s51
    %p57 = scmp.eq.s32.totalorder %s12, 0
    %p58 = por %p56, %p57
    %p59 = scmp.ne.s32.totalorder %s48, %s51
    %p60 = scmp.eq.s32.totalorder %s17, 3
    %p61 = por %p59, %p60
    %p62 = scmp.ne.s32.totalorder %s51, %s52
    %p63 = scmp.eq.s32.totalorder %s17, 0
    %p64 = por %p62, %p63
    %p65 = scmp.ne.s32.totalorder %s51, %s52
    %p66 = scmp.eq.s32.totalorder %s18, 3
    %p67 = por %p65, %p66
    %p69 = scmp.ne.s32.totalorder %s52, %s68
    %p70 = scmp.eq.s32.totalorder %s18, 0
    %p71 = por %p69, %p70
    %s73 = sadd.s32 %s72, 1
    %p76 = scmp.eq.s32.totalorder %s12, 3
    %p77 = scmp.ne.s32.totalorder %s72, %s74
    %p78 = scmp.eq.s32.totalorder %s12, 0
    %p79 = por %p77, %p78
    %p80 = scmp.ne.s32.totalorder %s72, %s74
    %p81 = scmp.eq.s32.totalorder %s17, 3
    %p82 = por %p80, %p81
    %p83 = scmp.ne.s32.totalorder %s74, %s75
    %p84 = scmp.eq.s32.totalorder %s17, 0
    %p85 = por %p83, %p84
    %p86 = scmp.ne.s32.totalorder %s74, %s75
    %p87 = scmp.eq.s32.totalorder %s18, 3
    %p88 = por %p86, %p87
    %p90 = scmp.ne.s32.totalorder %s75, %s89
    %p91 = scmp.eq.s32.totalorder %s18, 0
    %p92 = por %p90, %p91
    %s94 = sadd.s32 %s93, 1
    %p97 = scmp.eq.s32.totalorder %s12, 3
    %p98 = scmp.ne.s32.totalorder %s93, %s95
    %p99 = scmp.eq.s32.totalorder %s12, 0
    %p100 = por %p98, %p99
    %p101 = scmp.ne.s32.totalorder %s93, %s95
    %p102 = scmp.eq.s32.totalorder %s17, 3
    %p103 = por %p101, %p102
    %p104 = scmp.ne.s32.totalorder %s95, %s96
    %p105 = scmp.eq.s32.totalorder %s17, 0
    %p106 = por %p104, %p105
    %p107 = scmp.ne.s32.totalorder %s95, %s96
    %p108 = scmp.eq.s32.totalorder %s18, 3
    %p109 = por %p107, %p108
    %p111 = scmp.ne.s32.totalorder %s96, %s110
    %p112 = scmp.eq.s32.totalorder %s18, 0
    %p113 = por %p111, %p112
    %s114 = ssub.s32 %s12, %s19
    %p115 = scmp.eq.s32.totalorder %s114, 0
    %s117 = sadd.s32 %s116, 1
    %s118 = scalar_select %p115, %s116, %s117
    %p121 = pneg %p115
    %p122 = scmp.eq.s32.totalorder %s12, 3
    %p123 = por %p121, %p122
    %p124 = scmp.ne.s32.totalorder %s116, %s119
    %p125 = scmp.eq.s32.totalorder %s12, 0
    %p126 = por %p124, %p125
    %p127 = scmp.ne.s32.totalorder %s116, %s119
    %p128 = scmp.eq.s32.totalorder %s17, 3
    %p129 = por %p127, %p128
    %p130 = scmp.ne.s32.totalorder %s119, %s120
    %p131 = scmp.eq.s32.totalorder %s17, 0
    %p132 = por %p130, %p131
    %p133 = scmp.ne.s32.totalorder %s119, %s120
    %p134 = scmp.eq.s32.totalorder %s18, 3
    %p135 = por %p133, %p134
    %p137 = scmp.ne.s32.totalorder %s120, %s136
    %p138 = scmp.eq.s32.totalorder %s18, 0
    %p139 = por %p137, %p138
    %s140 = ssub.s32 %s12, %s19
    %p141 = scmp.eq.s32.totalorder %s140, 0
    %s143 = sadd.s32 %s142, 1
    %s144 = scalar_select %p141, %s142, %s143
    %p147 = pneg %p141
    %p148 = scmp.eq.s32.totalorder %s12, 3
    %p149 = por %p147, %p148
    %p150 = scmp.ne.s32.totalorder %s142, %s145
    %p151 = scmp.eq.s32.totalorder %s12, 0
    %p152 = por %p150, %p151
    %p153 = scmp.ne.s32.totalorder %s142, %s145
    %p154 = scmp.eq.s32.totalorder %s17, 3
    %p155 = por %p153, %p154
    %p156 = scmp.ne.s32.totalorder %s145, %s146
    %p157 = scmp.eq.s32.totalorder %s17, 0
    %p158 = por %p156, %p157
    %p159 = scmp.ne.s32.totalorder %s145, %s146
    %p160 = scmp.eq.s32.totalorder %s18, 3
    %p161 = por %p159, %p160
    %p163 = scmp.ne.s32.totalorder %s146, %s162
    %p164 = scmp.eq.s32.totalorder %s18, 0
    %p165 = por %p163, %p164
    %p166 = scmp.le.s32.totalorder 1, %s12
    %p167 = scmp.lt.s32.totalorder %s12, 5
    %p168 = pnand %p166, %p167
    %p169 = pneg %p168
    // Predicated region
    $region9: #{tpu_custom_call.1} parent=5 // pred_check
      _
    $region10: #{tpu_custom_call.1} parent=5 // pred_check_branch
      %171 = sbr.rel (%p168) target = $region12
    $region11: #{tpu_custom_call.1} parent=5 // pred_region
      %s172 = ssub.s32 %s12, 1
      // Predicated region
      $region13: #{tpu_custom_call.1} parent=11 // pred_check
        %p173 = pneg %p85
      $region14: #{tpu_custom_call.1} parent=11 // pred_check_branch
        %175 = sbr.rel (%p173) target = $region16
      $region15: #{tpu_custom_call.1} parent=11 // pred_region
        _
      $region16: #{tpu_custom_call.1} parent=11 // pred_fallthru
        _
      // Predicated region
      $region17: #{tpu_custom_call.1} parent=11 // pred_check
        %p176 = pneg %p106
      $region18: #{tpu_custom_call.1} parent=11 // pred_check_branch
        %178 = sbr.rel (%p176) target = $region20
      $region19: #{tpu_custom_call.1} parent=11 // pred_region
        _
      $region20: #{tpu_custom_call.1} parent=11 // pred_fallthru
        _
    $region12: #{tpu_custom_call.1} parent=5 // pred_fallthru
      _
    %p179 = scmp.lt.s32.totalorder %s12, 4
    // Predicated region
    $region21: #{tpu_custom_call.1} parent=5 // pred_check
      %p180 = pneg %p179
    $region22: #{tpu_custom_call.1} parent=5 // pred_check_branch
      %182 = sbr.rel (%p180) target = $region24
    $region23: #{tpu_custom_call.1} parent=5 // pred_region
      // Predicated region
      $region25: #{tpu_custom_call.1} parent=23 // pred_check
        %p183 = pneg %p32
      $region26: #{tpu_custom_call.1} parent=23 // pred_check_branch
        %185 = sbr.rel (%p183) target = $region28
      $region27: #{tpu_custom_call.1} parent=23 // pred_region
        %s186 = smul.u32 2, %s12
        %p187 = scmp.lt.s32.totalorder %s186, 7
        %s188 = scalar_select %p187, %s186, 7
        %s189 = smul.addr %s188, 8
        %s190 = scalar_lea.vmem %s0, %s189
        %s191 = smul.u32 2, %s12
      $region28: #{tpu_custom_call.1} parent=23 // pred_fallthru
        _
      // Predicated region
      $region29: #{tpu_custom_call.1} parent=23 // pred_check
        %p192 = pneg %p58
      $region30: #{tpu_custom_call.1} parent=23 // pred_check_branch
        %194 = sbr.rel (%p192) target = $region32
      $region31: #{tpu_custom_call.1} parent=23 // pred_region
        %s195 = smul.u32 2, %s12
        %p196 = scmp.lt.s32.totalorder %s195, 7
        %s197 = scalar_select %p196, %s195, 7
        %s198 = smul.addr %s197, 8
        %s199 = scalar_lea.vmem %s1, %s198
        %s200 = smul.u32 2, %s12
      $region32: #{tpu_custom_call.1} parent=23 // pred_fallthru
        _
    $region24: #{tpu_custom_call.1} parent=5 // pred_fallthru
      _
    %p201 = scmp.le.s32.totalorder 1, %s12
    %p202 = scmp.lt.s32.totalorder %s12, 5
    %p203 = pnand %p201, %p202
    %p204 = pneg %p203
    // Predicated region
    $region33: #{tpu_custom_call.1} parent=5 // pred_check
      _
    $region34: #{tpu_custom_call.1} parent=5 // pred_check_branch
      %206 = sbr.rel (%p203) target = $region36
    $region35: #{tpu_custom_call.1} parent=5 // pred_region
      %s207 = ssub.s32 %s12, 1
      %s208 = smul.u32 2, %s17
      %p209 = scmp.lt.s32.totalorder %s208, 7
      %s210 = scalar_select %p209, %s208, 7
      %s211 = smul.addr %s210, 8
      %s212 = scalar_lea.vmem %s0, %s211
      %p213 = pneg %p38
      %p214 = pneg %p35
      %s215 = smul.u32 2, %s17
      %p216 = scmp.lt.s32.totalorder %s215, 7
      %s217 = scalar_select %p216, %s215, 7
      %s218 = smul.addr %s217, 8
      %s219 = scalar_lea.vmem %s1, %s218
      %p220 = pneg %p64
      %p221 = pneg %p61
      %p222 = pneg %p85
      %p223 = pneg %p82
      %p224 = pneg %p106
      %p225 = pneg %p103
      %p226 = pneg %p132
      %p227 = pneg %p129
      %s228 = smul.u32 2, %s17
      %p229 = scmp.lt.s32.totalorder %s228, 7
      %s230 = scalar_select %p229, %s228, 7
      %s231 = smul.addr %s230, 8
      %s232 = scalar_lea.vmem %s4, %s231
      %p233 = pneg %p158
      %p234 = pneg %p155
      %s235 = smul.u32 2, %s17
      %p236 = scmp.lt.s32.totalorder %s235, 7
      %s237 = scalar_select %p236, %s235, 7
      %s238 = smul.addr %s237, 8
      %s239 = scalar_lea.vmem %s5, %s238
      %s240 = smul.u32 2, %s17
      %p241 = scmp.lt.s32.totalorder %s240, 7
      %s242 = scalar_select %p241, %s240, 7
      %s243 = smul.addr %s242, 8
      %s244 = scalar_lea.vmem %s0, %s243
      %s245 = smul.u32 2, %s17
      %s246 = smul.u32 2, %s17
      %p247 = scmp.lt.s32.totalorder %s246, 7
      %s248 = scalar_select %p247, %s246, 7
      %s249 = smul.addr %s248, 8
      %s250 = scalar_lea.vmem %s1, %s249
      %s251 = smul.u32 2, %s17
      %s252 = smul.u32 2, %s17
      %p253 = scmp.lt.s32.totalorder %s252, 7
      %s254 = scalar_select %p253, %s252, 7
      %s255 = smul.addr %s254, 8
      %s256 = scalar_lea.vmem %s4, %s255
      %s257 = smul.u32 2, %s17
      %s258 = smul.u32 2, %s17
      %p259 = scmp.lt.s32.totalorder %s258, 7
      %s260 = scalar_select %p259, %s258, 7
      %s261 = smul.addr %s260, 8
      %s262 = scalar_lea.vmem %s5, %s261
      %s263 = smul.u32 2, %s17
      %v264 = vld [vmem:[%s3] sm:$0x1]
      %v265 = vld [vmem:[%s244] sm:$0xff]
      %v266 = vld [vmem:[%s244 + $0x8] sm:$0xff]
      %v268 = vlaneseq
      %v269 = vshrl.u32 %v268, 7
      %v270 = vsub.s32 0, %v269
      %v271 = vrot.slane %v264, %v270
      %v273 = vmul.f32 %v265, %v271
      %v274 = vmul.f32 %v266, %v271
      %v275 = vld [vmem:[%s2] sm:$0x1]
      %v277 = vlaneseq
      %v278 = vshrl.u32 %v277, 7
      %v279 = vsub.s32 0, %v278
      %v280 = vrot.slane %v275, %v279
      %v282 = vadd.f32 %v273, %v280
      %v283 = vadd.f32 %v274, %v280
      %vm284 = vcmask 39936
      %285 = vst.msk [vmem:[%s256] sm:$0xff] %vm284, %v282
      %286 = vst.msk [vmem:[%s256 + $0x8] sm:$0xff] %vm284, %v283
      %v287 = vld [vmem:[%s250] sm:$0xff]
      %v288 = vld [vmem:[%s250 + $0x8] sm:$0xff]
      %v289 = vsub.f32 0.0, %v287
      %v290 = vsub.f32 0.0, %v288
      %v291 = vmul.f32 %v289, 1.442695
      %v292 = vpow.pop %v291
      %v293 = vmul.f32 %v290, 1.442695
      %v294 = vpow.pop %v293
      %v295 = vadd.f32 %v292, 1.0
      %v296 = vadd.f32 %v294, 1.0
      %v297 = vrcp.pop %v295
      %v298 = vmul.f32 1.0, %v297
      %v299 = vrcp.pop %v296
      %v300 = vmul.f32 1.0, %v299
      %v301 = vmul.f32 %v298, %v271
      %v302 = vmul.f32 %v300, %v271
      %303 = vst.msk [vmem:[%s262] sm:$0xff] %vm284, %v301
      %304 = vst.msk [vmem:[%s262 + $0x8] sm:$0xff] %vm284, %v302
      %s305 = smul.u32 2, %s17
      %p306 = scmp.lt.s32.totalorder %s305, 7
      %s307 = scalar_select %p306, %s305, 7
      %s308 = smul.addr %s307, 8
      %s309 = scalar_lea.vmem %s4, %s308
      %s310 = smul.u32 2, %s17
      %p311 = scmp.lt.s32.totalorder %s310, 7
      %s312 = scalar_select %p311, %s310, 7
      %s313 = smul.addr %s312, 8
      %s314 = scalar_lea.vmem %s5, %s313
      // Predicated region
      $region37: #{tpu_custom_call.1} parent=35 // pred_check
        %p315 = pneg %p129
      $region38: #{tpu_custom_call.1} parent=35 // pred_check_branch
        %317 = sbr.rel (%p315) target = $region40
      $region39: #{tpu_custom_call.1} parent=35 // pred_region
        %s318 = smul.u32 2, %s17
      $region40: #{tpu_custom_call.1} parent=35 // pred_fallthru
        _
      // Predicated region
      $region41: #{tpu_custom_call.1} parent=35 // pred_check
        %p319 = pneg %p155
      $region42: #{tpu_custom_call.1} parent=35 // pred_check_branch
        %321 = sbr.rel (%p319) target = $region44
      $region43: #{tpu_custom_call.1} parent=35 // pred_region
        %s322 = smul.u32 2, %s17
      $region44: #{tpu_custom_call.1} parent=35 // pred_fallthru
        _
    $region36: #{tpu_custom_call.1} parent=5 // pred_fallthru
      _
    %p323 = scmp.le.s32.totalorder 2, %s12
    // Predicated region
    $region45: #{tpu_custom_call.1} parent=5 // pred_check
      %p324 = pneg %p323
    $region46: #{tpu_custom_call.1} parent=5 // pred_check_branch
      %326 = sbr.rel (%p324) target = $region48
    $region47: #{tpu_custom_call.1} parent=5 // pred_region
      %s327 = ssub.s32 %s12, 2
      // Predicated region
      $region49: #{tpu_custom_call.1} parent=47 // pred_check
        %p328 = pneg %p135
      $region50: #{tpu_custom_call.1} parent=47 // pred_check_branch
        %330 = sbr.rel (%p328) target = $region52
      $region51: #{tpu_custom_call.1} parent=47 // pred_region
        %s331 = smul.u32 2, %s18
        %p332 = scmp.lt.s32.totalorder %s331, 7
        %s333 = scalar_select %p332, %s331, 7
        %s334 = smul.addr %s333, 8
        %s335 = scalar_lea.vmem %s4, %s334
      $region52: #{tpu_custom_call.1} parent=47 // pred_fallthru
        _
      // Predicated region
      $region53: #{tpu_custom_call.1} parent=47 // pred_check
        %p336 = pneg %p161
      $region54: #{tpu_custom_call.1} parent=47 // pred_check_branch
        %338 = sbr.rel (%p336) target = $region56
      $region55: #{tpu_custom_call.1} parent=47 // pred_region
        %s339 = smul.u32 2, %s18
        %p340 = scmp.lt.s32.totalorder %s339, 7
        %s341 = scalar_select %p340, %s339, 7
        %s342 = smul.addr %s341, 8
        %s343 = scalar_lea.vmem %s5, %s342
      $region56: #{tpu_custom_call.1} parent=47 // pred_fallthru
        _
    $region48: #{tpu_custom_call.1} parent=5 // pred_fallthru
      _
  $region6: #{tpu_custom_call.1} parent=0 // loop_footer
    %s16 = sadd.s32 1, %s12
  $region7: #{tpu_custom_call.1} parent=0 // loop_footer_branch
    %11 = sbr.rel target = $region3
  $region8: #{tpu_custom_call.1} parent=0 // loop_exit
    _

</llo_original>
